<compile_context>
chip_gen: v7x
topology: tpu7x:2x2x1
jax: 0.10.0
libtpu: 0.0.40
codegen_flags: <defaults>
</compile_context>

<pallas_src>
import math

import numpy as np
import jax
import jax.numpy as jnp
from jax import lax
from jax.experimental import pallas as pl
from jax.experimental.pallas import tpu as pltpu

_MIB = 1 << 20


def _round_up(v, m):
    return ((v + m - 1) // m) * m


def _vmem_budget_bytes():
    """Physical VMEM per core minus headroom (never assume more than v7x's 64 MiB)."""
    try:
        cap = int(pltpu.get_tpu_info().vmem_capacity_bytes)
    except Exception:  # not queryable -> assume smallest generation (v7x, 64 MiB)
        cap = 64 * _MIB
    # ~54 MiB usable on v7x (64 MiB), ~108 MiB on v5e/v6e (128 MiB).
    return min(int(cap * 0.85), cap - 8 * _MIB)


def _choose_tile_rows(rows, d_out_p, sublane):
    # Narrow-N (one 128-lane output tile): taller M tile amortizes the weight push.
    target = 512 if d_out_p <= 128 else 256
    if rows >= 8 * target:          # >= 8 steps -> >= 4 per TC on v7x megacore
        return target
    if rows >= 8 * 128:
        return 128                  # floor per review: never starve the MXU with 8-32 rows
    # tiny input: one full-size grid step beats several starved steps
    return max(_round_up(rows, sublane), sublane)


# ---------------------------------------------------------------- kernels ----

def _proj_kernel_resident(x_ref, w_ref, b_ref, o_ref):
    # x_ref: (TM, D_in)  w_ref: (D_in, D_out) resident  b_ref: (1, D_out)  o_ref: (TM, D_out)
    x = x_ref[...]
    xf = x.astype(jnp.float32)
    inv_xn = lax.rsqrt(jnp.sum(xf * xf, axis=-1, keepdims=True))   # deferred input norm
    xd = x if x.dtype == w_ref.dtype else x.astype(w_ref.dtype)
    y = jnp.dot(xd, w_ref[...], preferred_element_type=jnp.float32)
    y = y * inv_xn + b_ref[...].astype(jnp.float32)
    inv_yn = lax.rsqrt(jnp.sum(y * y, axis=-1, keepdims=True))
    o_ref[...] = (y * inv_yn).astype(o_ref.dtype)


def _proj_kernel_ktiled(x_ref, w_ref, b_ref, o_ref, acc_ref, ss_ref):
    # grid = (rows/TM, D_in/TK); acc_ref: (TM, D_out) f32, ss_ref: (TM, 1) f32
    k = pl.program_id(1)

    @pl.when(k == 0)
    def _():
        acc_ref[...] = jnp.zeros_like(acc_ref)
        ss_ref[...] = jnp.zeros_like(ss_ref)

    x = x_ref[...]
    xf = x.astype(jnp.float32)
    ss_ref[...] += jnp.sum(xf * xf, axis=-1, keepdims=True)
    xd = x if x.dtype == w_ref.dtype else x.astype(w_ref.dtype)
    acc_ref[...] += jnp.dot(xd, w_ref[...], preferred_element_type=jnp.float32)

    @pl.when(k == pl.num_programs(1) - 1)
    def _():
        inv_xn = lax.rsqrt(ss_ref[...])
        y = acc_ref[...] * inv_xn + b_ref[...].astype(jnp.float32)
        inv_yn = lax.rsqrt(jnp.sum(y * y, axis=-1, keepdims=True))
        o_ref[...] = (y * inv_yn).astype(o_ref.dtype)


# ---------------------------------------------------------------- wrapper ----

def projection_layer(x, weight, bias, *, matmul_dtype=None, k_tile=None):
    """Pallas ProjectionLayer(nn.Linear(D_in, D_out), projection=True, norm=True).

    x: (..., D_in); weight: (D_in, D_out) (transpose of torch Linear.weight); bias: (D_out,)
    matmul_dtype: optional (e.g. jnp.bfloat16) accuracy-affecting MXU dtype for the weight.
    k_tile: force the K-tiled accumulator path with this d_in tile (testing / huge weights).
    """
    d_in, d_out = weight.shape
    lead = x.shape[:-1]
    rows = int(math.prod(lead)) if lead else 1
    out_dtype = x.dtype
    x2 = x.reshape(rows, d_in)

    if matmul_dtype is not None:
        weight = weight.astype(matmul_dtype)   # norms / bias / accumulation stay f32

    # Pad feature dims to lane width (128): zero cols / zero weight rows / zero bias
    # change neither L2 norm nor the matmul, and keep loads & stores lane-dense.
    d_in_p = _round_up(d_in, 128)
    d_out_p = _round_up(d_out, 128)
    if d_in_p != d_in:
        x2 = jnp.pad(x2, ((0, 0), (0, d_in_p - d_in)))
        weight = jnp.pad(weight, ((0, d_in_p - d_in), (0, 0)))
    if d_out_p != d_out:
        weight = jnp.pad(weight, ((0, 0), (0, d_out_p - d_out)))
        bias = jnp.pad(bias, ((0, d_out_p - d_out),))
    b2 = bias.reshape(1, d_out_p)

    x_item = x2.dtype.itemsize
    w_item = weight.dtype.itemsize
    out_item = jnp.dtype(out_dtype).itemsize
    b_item = b2.dtype.itemsize
    sublane = 16 if x_item == 2 else 8

    usable = _vmem_budget_bytes()
    weight_bytes = d_in_p * d_out_p * w_item
    use_ktile = (k_tile is not None) or (weight_bytes > usable // 3)

    tm = _choose_tile_rows(rows, d_out_p, sublane)

    tk = None
    if use_ktile:
        if k_tile is not None:
            tk = min(_round_up(int(k_tile), 128), d_in_p)
        else:
            tk = max(128, min(1024, _round_up(d_in_p // 8, 128)))  # ~8 K-steps, <=1024
        d_in_g = _round_up(d_in_p, tk)
        if d_in_g != d_in_p:
            x2 = jnp.pad(x2, ((0, 0), (0, d_in_g - d_in_p)))
            weight = jnp.pad(weight, ((0, d_in_g - d_in_p), (0, 0)))
            d_in_p = d_in_g

    def _vmem_needed(tm_):
        if use_ktile:
            return (2 * tm_ * tk * x_item            # x tiles (double-buffered)
                    + 2 * tk * d_out_p * w_item      # weight K-slabs (double-buffered)
                    + 2 * tm_ * d_out_p * out_item   # out tiles
                    + d_out_p * b_item               # bias, single-buffered
                    + tm_ * d_out_p * 4              # f32 matmul accumulator scratch
                    + tm_ * 128 * 4)                 # (tm,1) f32 scratch (lane-padded)
        return (2 * tm_ * d_in_p * x_item
                + 2 * tm_ * d_out_p * out_item
                + d_in_p * d_out_p * w_item          # weight resident, single-buffered
                + d_out_p * b_item)

    while _vmem_needed(tm) > usable and tm > sublane:
        tm = max((tm // 2) // sublane * sublane, sublane)

    padded_rows = _round_up(rows, tm)
    if padded_rows != rows:
        # nonzero pad keeps rsqrt(||x||^2) finite on the (discarded) pad rows
        x2 = jnp.pad(x2, ((0, padded_rows - rows), (0, 0)), constant_values=1.0)

    vmem_limit = int(min(max(_vmem_needed(tm) + 4 * _MIB, 16 * _MIB), usable))
    cost = pl.CostEstimate(
        flops=int(2 * padded_rows * d_in_p * d_out_p),
        transcendentals=int(2 * padded_rows),
        bytes_accessed=int(padded_rows * (d_in_p * x_item + d_out_p * out_item)
                           + d_in_p * d_out_p * w_item),
    )

    if use_ktile:
        grid = (padded_rows // tm, d_in_p // tk)
        out = pl.pallas_call(
            _proj_kernel_ktiled,
            out_shape=jax.ShapeDtypeStruct((padded_rows, d_out_p), out_dtype),
            grid_spec=pltpu.PrefetchScalarGridSpec(
                num_scalar_prefetch=0,
                grid=grid,
                in_specs=[
                    pl.BlockSpec((tm, tk), lambda i, k: (i, k)),
                    pl.BlockSpec((tk, d_out_p), lambda i, k: (k, 0)),
                    pl.BlockSpec((1, d_out_p), lambda i, k: (0, 0),
                                 pipeline_mode=pl.Buffered(1)),
                ],
                out_specs=pl.BlockSpec((tm, d_out_p), lambda i, k: (i, 0)),
                scratch_shapes=[
                    pltpu.VMEM((tm, d_out_p), jnp.float32),
                    pltpu.VMEM((tm, 1), jnp.float32),
                ],
            ),
            compiler_params=pltpu.CompilerParams(
                dimension_semantics=("parallel", "arbitrary"),
                vmem_limit_bytes=vmem_limit,
            ),
            cost_estimate=cost,
        )(x2, weight, b2)
    else:
        grid = (padded_rows // tm,)
        out = pl.pallas_call(
            _proj_kernel_resident,
            out_shape=jax.ShapeDtypeStruct((padded_rows, d_out_p), out_dtype),
            grid_spec=pltpu.PrefetchScalarGridSpec(
                num_scalar_prefetch=0,
                grid=grid,
                in_specs=[
                    pl.BlockSpec((tm, d_in_p), lambda i: (i, 0)),
                    # grid-invariant operands: single-buffered to halve resident footprint
                    pl.BlockSpec((d_in_p, d_out_p), lambda i: (0, 0),
                                 pipeline_mode=pl.Buffered(1)),
                    pl.BlockSpec((1, d_out_p), lambda i: (0, 0),
                                 pipeline_mode=pl.Buffered(1)),
                ],
                out_specs=pl.BlockSpec((tm, d_out_p), lambda i: (i, 0)),
            ),
            compiler_params=pltpu.CompilerParams(
                dimension_semantics=("parallel",),
                vmem_limit_bytes=vmem_limit,
            ),
            cost_estimate=cost,
        )(x2, weight, b2)

    out = out[:rows, :d_out]
    return out.reshape(*lead, d_out)


# -------------------------------------------------------------- reference ----

def _reference_np(x, weight, bias):
    # float64 numpy reference (independent of TPU matmul precision)
    xf = np.asarray(x, np.float64)
    xn = xf / np.linalg.norm(xf, axis=-1, keepdims=True)
    y = xn @ np.asarray(weight, np.float64) + np.asarray(bias, np.float64)
    return y / np.linalg.norm(y, axis=-1, keepdims=True)


if __name__ == "__main__":
    key = jax.random.PRNGKey(0)
    k_x, k_w, k_b = jax.random.split(key, 3)

    batch, seq, d_in, d_out = 2, 8, 32, 32
    x = jax.random.normal(k_x, (batch, seq, d_in), dtype=jnp.float32)
    # deterministic synthetic "Linear" params (weight is the transpose of torch's)
    weight = jax.random.normal(k_w, (d_in, d_out), dtype=jnp.float32) * 0.02
    bias = jax.random.normal(k_b, (d_out,), dtype=jnp.float32) * 0.01

    # resident-weight path
    out = jax.block_until_ready(projection_layer(x, weight, bias))
    ref = _reference_np(x, weight, bias)
    assert out.shape == (batch, seq, d_out)
    # tolerance covers MXU f32 default precision (bf16 passes) + deferred-norm reordering
    assert float(np.max(np.abs(np.asarray(out, np.float64) - ref))) < 5e-3

    # K-tiled accumulator path (forced small K tile to exercise it at toy sizes)
    d_in2 = 384
    x2 = jax.random.normal(k_x, (batch, seq, d_in2), dtype=jnp.float32)
    w2 = jax.random.normal(k_w, (d_in2, d_out), dtype=jnp.float32) * 0.02
    out2 = jax.block_until_ready(projection_layer(x2, w2, bias, k_tile=128))
    ref2 = _reference_np(x2, w2, bias)
    assert out2.shape == (batch, seq, d_out)
    assert float(np.max(np.abs(np.asarray(out2, np.float64) - ref2))) < 5e-3

    print("KERNEL_OK")
</pallas_src>

<mosaic_0001>
module attributes {stable_mosaic.version = 11 : i64} {
  func.func @_proj_kernel_resident(%arg0: i32, %arg1: memref<16x128xf32, #tpu.memory_space<vmem>>, %arg2: memref<128x128xf32, #tpu.memory_space<vmem>>, %arg3: memref<1x128xf32, #tpu.memory_space<vmem>>, %arg4: memref<16x128xf32, #tpu.memory_space<vmem>>) attributes {dimension_semantics = [#tpu.dimension_semantics<parallel>], iteration_bounds = array<i64: 1>, scalar_prefetch = 0 : i64, scratch_operands = 0 : i64, tpu.core_type = #tpu.core_type<tc>, window_params = [{transform_indices = @transform_0, window_bounds = array<i64: 16, 128>}, {pipeline_mode = #tpu.pipeline_mode<synchronous>, transform_indices = @transform_1, window_bounds = array<i64: 128, 128>}, {pipeline_mode = #tpu.pipeline_mode<synchronous>, transform_indices = @transform_2, window_bounds = array<i64: 1, 128>}, {transform_indices = @transform_3, window_bounds = array<i64: 16, 128>}]} {
    %c0 = arith.constant 0 : index
    %c0_0 = arith.constant 0 : index
    %0 = vector.load %arg1[%c0, %c0_0] : memref<16x128xf32, #tpu.memory_space<vmem>>, vector<16x128xf32>
    %1 = arith.mulf %0, %0 : vector<16x128xf32>
    %cst = arith.constant dense<0.000000e+00> : vector<16xf32>
    %2 = vector.multi_reduction <add>, %1, %cst [1] : vector<16x128xf32> to vector<16xf32>
    %3 = vector.shape_cast %2 : vector<16xf32> to vector<16x1xf32>
    %4 = math.rsqrt %3 : vector<16x1xf32>
    %c0_1 = arith.constant 0 : index
    %c0_2 = arith.constant 0 : index
    %5 = vector.load %arg2[%c0_1, %c0_2] : memref<128x128xf32, #tpu.memory_space<vmem>>, vector<128x128xf32>
    %cst_3 = arith.constant dense<0.000000e+00> : vector<16x128xf32>
    %6 = tpu.matmul %0, %5, %cst_3 {dimension_numbers = #tpu.dot_dimension_numbers<[1], [0], [0], [1], [0, 0, 1, 1], [], []>} : vector<16x128xf32>, vector<128x128xf32>, vector<16x128xf32> -> vector<16x128xf32>
    %7 = vector.broadcast %4 : vector<16x1xf32> to vector<16x128xf32>
    %8 = arith.mulf %6, %7 : vector<16x128xf32>
    %c0_4 = arith.constant 0 : index
    %c0_5 = arith.constant 0 : index
    %9 = vector.load %arg3[%c0_4, %c0_5] : memref<1x128xf32, #tpu.memory_space<vmem>>, vector<1x128xf32>
    %10 = vector.broadcast %9 : vector<1x128xf32> to vector<16x128xf32>
    %11 = arith.addf %8, %10 : vector<16x128xf32>
    %12 = arith.mulf %11, %11 : vector<16x128xf32>
    %cst_6 = arith.constant dense<0.000000e+00> : vector<16xf32>
    %13 = vector.multi_reduction <add>, %12, %cst_6 [1] : vector<16x128xf32> to vector<16xf32>
    %14 = vector.shape_cast %13 : vector<16xf32> to vector<16x1xf32>
    %15 = math.rsqrt %14 : vector<16x1xf32>
    %16 = vector.broadcast %15 : vector<16x1xf32> to vector<16x128xf32>
    %17 = arith.mulf %11, %16 : vector<16x128xf32>
    %c0_7 = arith.constant 0 : index
    %c0_8 = arith.constant 0 : index
    %18 = vector.load %arg4[%c0_7, %c0_8] : memref<16x128xf32, #tpu.memory_space<vmem>>, vector<16x128xf32>
    tpu.vector_store %arg4[%c0_7, %c0_8], %17 {strides = array<i32>} : memref<16x128xf32, #tpu.memory_space<vmem>>, vector<16x128xf32>,
    return
  }
  func.func @transform_0(%arg0: i32) -> (i32, i32) {
    %c0_i32 = arith.constant 0 : i32
    %c0_i32_0 = arith.constant 0 : i32
    return %arg0, %c0_i32 : i32, i32
  }
  func.func @transform_1(%arg0: i32) -> (i32, i32) {
    %c0_i32 = arith.constant 0 : i32
    %c0_i32_0 = arith.constant 0 : i32
    %c0_i32_1 = arith.constant 0 : i32
    return %c0_i32, %c0_i32_0 : i32, i32
  }
  func.func @transform_2(%arg0: i32) -> (i32, i32) {
    %c0_i32 = arith.constant 0 : i32
    %c0_i32_0 = arith.constant 0 : i32
    %c0_i32_1 = arith.constant 0 : i32
    return %c0_i32, %c0_i32_0 : i32, i32
  }
  func.func @transform_3(%arg0: i32) -> (i32, i32) {
    %c0_i32 = arith.constant 0 : i32
    %c0_i32_0 = arith.constant 0 : i32
    return %arg0, %c0_i32 : i32, i32
  }
}

</mosaic_0001>

<llo_original>
// kernel: tpu_custom_call.1
$region0: #{tpu_custom_call.1}
  #allocation0 [shape = 'u32[]', space=smem, size = 0x4, offset = 0x4, fixed_abs, tag = 'smem constant byte address 0x4 - core index']
  #allocation1 [shape = 'u32[144,128]{1,0:T(1,128)}', space=vmem, size = 0x12000, scoped, tag = 'internal scratch']
  %s0 = inlined_call_operand.hbm [shape: f32[16,128], index: 0, kind: input, shape index: {}]
  %s1 = inlined_call_operand.hbm [shape: f32[128,128], index: 1, kind: input, shape index: {}]
  %s2 = inlined_call_operand.vmem [shape: f32[1,128], index: 2, kind: input, shape index: {}]
  %s3 = inlined_call_operand.hbm [shape: f32[16,128], index: 3, kind: output, shape index: {}]
  %s4 = sld [smem:[#allocation0]]
  $region30: #{tpu_custom_call.1} parent=0
    _
  %s6 = ssub.s32 1, %s4
  %s7 = scalar_select 0, %s6, %s4
  $region1: #{tpu_custom_call.1} parent=0
    #allocation2 [shape = 'u8[8192]{0}', space=vmem, size = 0x2000, scoped, tag = 'input window, operand 0, single buffered']
    #allocation3 [shape = 's32[1]{0}', space=sflag, size = 0x4, scoped, tag = 'scoped memory for tpu_custom_call.1']
    #allocation4 [shape = 's32[1]{0}', space=sflag, size = 0x4, scoped, tag = 'scoped memory for tpu_custom_call.1']
    #allocation5 [shape = 'u8[65536]{0}', space=vmem, size = 0x10000, scoped, tag = 'input window, operand 1, single buffered']
    #allocation6 [shape = 's32[1]{0}', space=sflag, size = 0x4, scoped, tag = 'scoped memory for tpu_custom_call.1']
    #allocation7 [shape = 'u8[8192]{0}', space=vmem, size = 0x2000, scoped, tag = 'output window, operand 0, single buffered']
    %8 = vsyncpa [#allocation3], 0
    %9 = vsyncpa [#allocation6], 0
    %10 = vsyncpa [#allocation4], 0
    // Predicated region
    $region2: #{tpu_custom_call.1} parent=1 // pred_check
      _
    $region3: #{tpu_custom_call.1} parent=1 // pred_check_branch
      %12 = sbr.rel (0) target = $region5
    $region4: #{tpu_custom_call.1} parent=1 // pred_region
      %s14 = ssub.s32 256, 256
      %15 = vsyncadd [#allocation3], %s14
      %s16 = sshll.u32 [#allocation2], 4
      %s17 = int_to_ptr.vmem [resolvable:$true] %s16
      %22 = dma.hbm_to_vmem [thread:$0]  %s0, 256, %s17, [#allocation3], 128, 128, 8
    $region5: #{tpu_custom_call.1} parent=1 // pred_fallthru
      _
    // Predicated region
    $region6: #{tpu_custom_call.1} parent=1 // pred_check
      _
    $region7: #{tpu_custom_call.1} parent=1 // pred_check_branch
      %24 = sbr.rel (0) target = $region9
    $region8: #{tpu_custom_call.1} parent=1 // pred_region
      %s26 = ssub.s32 2048, 2048
      %27 = vsyncadd [#allocation6], %s26
      %s28 = sshll.u32 [#allocation5], 4
      %s29 = int_to_ptr.vmem [resolvable:$true] %s28
      %34 = dma.hbm_to_vmem [thread:$0]  %s1, 2048, %s29, [#allocation6], 128, 128, 8
    $region9: #{tpu_custom_call.1} parent=1 // pred_fallthru
      _
    // Predicated region
    $region10: #{tpu_custom_call.1} parent=1 // pred_check
      _
    $region11: #{tpu_custom_call.1} parent=1 // pred_check_branch
      %36 = sbr.rel (0) target = $region13
    $region12: #{tpu_custom_call.1} parent=1 // pred_region
      _
    $region13: #{tpu_custom_call.1} parent=1 // pred_fallthru
      _
    // Predicated region
    $region14: #{tpu_custom_call.1} parent=1 // pred_check
      _
    $region15: #{tpu_custom_call.1} parent=1 // pred_check_branch
      %38 = sbr.rel (0) target = $region17
    $region16: #{tpu_custom_call.1} parent=1 // pred_region
      %39 = dma.done [#allocation3], 256
    $region17: #{tpu_custom_call.1} parent=1 // pred_fallthru
      _
    // Predicated region
    $region18: #{tpu_custom_call.1} parent=1 // pred_check
      _
    $region19: #{tpu_custom_call.1} parent=1 // pred_check_branch
      %41 = sbr.rel (0) target = $region21
    $region20: #{tpu_custom_call.1} parent=1 // pred_region
      %42 = dma.done [#allocation6], 2048
    $region21: #{tpu_custom_call.1} parent=1 // pred_fallthru
      _
    %v43 = vld [vmem:[#allocation2] sm:$0xff]
    %v44 = vld [vmem:[#allocation2 + $0x8] sm:$0xff]
    %v45 = vmul.f32 %v43, %v43
    %v46 = vmul.f32 %v44, %v44
    %47 = vadd.xlane.f32.xlu0 %v45
    %v48 = vpop.xlane.xlu0 %47
    %49 = vadd.xlane.f32.xlu0 %v46
    %v50 = vpop.xlane.xlu0 %49
    %v51 = vrsqrt.pop %v48
    %v52 = vrsqrt.pop %v50
    %v53 = vld [vmem:[#allocation5] sm:$0xff]
    %v54 = vld [vmem:[#allocation5 + $0x8] sm:$0xff]
    %v55 = vld [vmem:[#allocation5 + $0x10] sm:$0xff]
    %v56 = vld [vmem:[#allocation5 + $0x18] sm:$0xff]
    %v57 = vld [vmem:[#allocation5 + $0x20] sm:$0xff]
    %v58 = vld [vmem:[#allocation5 + $0x28] sm:$0xff]
    %v59 = vld [vmem:[#allocation5 + $0x30] sm:$0xff]
    %v60 = vld [vmem:[#allocation5 + $0x38] sm:$0xff]
    %v61 = vld [vmem:[#allocation5 + $0x40] sm:$0xff]
    %v62 = vld [vmem:[#allocation5 + $0x48] sm:$0xff]
    %v63 = vld [vmem:[#allocation5 + $0x50] sm:$0xff]
    %v64 = vld [vmem:[#allocation5 + $0x58] sm:$0xff]
    %v65 = vld [vmem:[#allocation5 + $0x60] sm:$0xff]
    %v66 = vld [vmem:[#allocation5 + $0x68] sm:$0xff]
    %v67 = vld [vmem:[#allocation5 + $0x70] sm:$0xff]
    %v68 = vld [vmem:[#allocation5 + $0x78] sm:$0xff]
    %69 = vmatprep.subr.mxu0 0.0
    %70 = vmatpush1.msra.mxu0 %v53
    %71 = vmatprep.subr.mxu0 0.0
    %72 = vmatpush1.msra.mxu0 %v54
    %73 = vmatprep.subr.mxu0 0.0
    %74 = vmatpush1.msra.mxu0 %v55
    %75 = vmatprep.subr.mxu0 0.0
    %76 = vmatpush1.msra.mxu0 %v56
    %77 = vmatprep.subr.mxu0 0.0
    %78 = vmatpush1.msra.mxu0 %v57
    %79 = vmatprep.subr.mxu0 0.0
    %80 = vmatpush1.msra.mxu0 %v58
    %81 = vmatprep.subr.mxu0 0.0
    %82 = vmatpush1.msra.mxu0 %v59
    %83 = vmatprep.subr.mxu0 0.0
    %84 = vmatpush1.msra.mxu0 %v60
    %85 = vmatprep.subr.mxu0 0.0
    %86 = vmatpush1.msra.mxu0 %v61
    %87 = vmatprep.subr.mxu0 0.0
    %88 = vmatpush1.msra.mxu0 %v62
    %89 = vmatprep.subr.mxu0 0.0
    %90 = vmatpush1.msra.mxu0 %v63
    %91 = vmatprep.subr.mxu0 0.0
    %92 = vmatpush1.msra.mxu0 %v64
    %93 = vmatprep.subr.mxu0 0.0
    %94 = vmatpush1.msra.mxu0 %v65
    %95 = vmatprep.subr.mxu0 0.0
    %96 = vmatpush1.msra.mxu0 %v66
    %97 = vmatprep.subr.mxu0 0.0
    %98 = vmatpush1.msra.mxu0 %v67
    %99 = vmatprep.subr.mxu0 0.0
    %100 = vmatpush1.msra.mxu0 %v68
    %101 = vmatprep.subr.mxu0 0.0
    %102 = vmatpush1.msra.mxu0 0.0
    %103 = vmatprep.subr.mxu0 0.0
    %104 = vmatpush1.msra.mxu0 0.0
    %105 = vmatprep.subr.mxu0 0.0
    %106 = vmatpush1.msra.mxu0 0.0
    %107 = vmatprep.subr.mxu0 0.0
    %108 = vmatpush1.msra.mxu0 0.0
    %109 = vmatprep.subr.mxu0 0.0
    %110 = vmatpush1.msra.mxu0 0.0
    %111 = vmatprep.subr.mxu0 0.0
    %112 = vmatpush1.msra.mxu0 0.0
    %113 = vmatprep.subr.mxu0 0.0
    %114 = vmatpush1.msra.mxu0 0.0
    %115 = vmatprep.subr.mxu0 0.0
    %116 = vmatpush1.msra.mxu0 0.0
    %117 = vmatprep.subr.mxu0 0.0
    %118 = vmatpush1.msra.mxu0 0.0
    %119 = vmatprep.subr.mxu0 0.0
    %120 = vmatpush1.msra.mxu0 0.0
    %121 = vmatprep.subr.mxu0 0.0
    %122 = vmatpush1.msra.mxu0 0.0
    %123 = vmatprep.subr.mxu0 0.0
    %124 = vmatpush1.msra.mxu0 0.0
    %125 = vmatprep.subr.mxu0 0.0
    %126 = vmatpush1.msra.mxu0 0.0
    %127 = vmatprep.subr.mxu0 0.0
    %128 = vmatpush1.msra.mxu0 0.0
    %129 = vmatprep.subr.mxu0 0.0
    %130 = vmatpush1.msra.mxu0 0.0
    %131 = vmatprep.subr.mxu0 0.0
    %132 = vmatpush1.msra.mxu0 0.0
    %133 = vmatprep.mubr.f32.mxu0 0.0
    %134 = vmatmul.mubr.f32.gmra.mrb[0].mxu0 %v43
    %v135 = vpop.f32.mrb[0].mxu0
    %v136 = vadd.f32 0.0, %v135
    %v137 = vpop.f32.mrb[0].mxu0
    %138 = vmatprep.mubr.f32.mxu0 0.0
    %139 = vmatmul.mubr.f32.gmra.mrb[0].mxu0 %v44
    %v140 = vpop.f32.mrb[0].mxu0
    %v141 = vadd.f32 0.0, %v140
    %v142 = vpop.f32.mrb[0].mxu0
    %143 = vdwg.mxu0
    %v144 = vmul.f32 %v136, %v51
    %v145 = vmul.f32 %v141, %v52
    %v146 = vld [vmem:[%s2] sm:$0x1]
    %v148 = vlaneseq
    %v149 = vshrl.u32 %v148, 7
    %v150 = vsub.s32 0, %v149
    %v151 = vrot.slane %v146, %v150
    %v153 = vadd.f32 %v144, %v151
    %v154 = vadd.f32 %v145, %v151
    %v155 = vmul.f32 %v153, %v153
    %v156 = vmul.f32 %v154, %v154
    %157 = vadd.xlane.f32.xlu0 %v155
    %v158 = vpop.xlane.xlu0 %157
    %159 = vadd.xlane.f32.xlu0 %v156
    %v160 = vpop.xlane.xlu0 %159
    %v161 = vrsqrt.pop %v158
    %v162 = vrsqrt.pop %v160
    %v163 = vmul.f32 %v153, %v161
    %v164 = vmul.f32 %v154, %v162
    %165 = vst [vmem:[#allocation7] sm:$0xff] %v163
    %166 = vst [vmem:[#allocation7 + $0x8] sm:$0xff] %v164
    // Predicated region
    $region22: #{tpu_custom_call.1} parent=1 // pred_check
      _
    $region23: #{tpu_custom_call.1} parent=1 // pred_check_branch
      %168 = sbr.rel (0) target = $region25
    $region24: #{tpu_custom_call.1} parent=1 // pred_region
      %s170 = ssub.s32 256, 256
      %171 = vsyncadd [#allocation4], %s170
      %s172 = sshll.u32 [#allocation7], 4
      %s173 = int_to_ptr.vmem [resolvable:$true] %s172
      %178 = dma.vmem_to_hbm [thread:$0]  %s173, 256, %s3, [#allocation4], 128, 128, 8
    $region25: #{tpu_custom_call.1} parent=1 // pred_fallthru
      _
    // Predicated region
    $region26: #{tpu_custom_call.1} parent=1 // pred_check
      _
    $region27: #{tpu_custom_call.1} parent=1 // pred_check_branch
      %180 = sbr.rel (0) target = $region29
    $region28: #{tpu_custom_call.1} parent=1 // pred_region
      %181 = dma.done [#allocation4], 256
    $region29: #{tpu_custom_call.1} parent=1 // pred_fallthru
      _
    %182 = vsyncpa [#allocation3], 1
    %183 = vsyncpa [#allocation6], 1
    %184 = vsyncpa [#allocation4], 1

</llo_original>
